<compile_context>
chip_gen: v7x
topology: tpu7x:2x2x1
jax: 0.10.0
libtpu: 0.0.40
codegen_flags: <defaults>
</compile_context>

<pallas_src>
import jax
import jax.numpy as jnp
from jax.experimental import pallas as pl
from jax.experimental.pallas import tpu as pltpu


def _gfft_kernel(x_ref, b_ref, o_ref):
    # MXU matmul with f32 accumulate, then elementwise sin on the VPU.
    acc = jnp.dot(x_ref[...], b_ref[...], preferred_element_type=jnp.float32)
    o_ref[...] = jnp.sin(acc).astype(o_ref.dtype)


def gaussian_fourier_feature_transform(x, B, *, tile_m=8192):
    """Apply y = sin(x @ B) with a Pallas TPU kernel.

    x: (1, N, C) or (N, C) float32  (leading size-1 dim is squeezed, matching
       torch's x.squeeze(0) behaviour)
    B: (C, mapping_size) float32
    returns: (N, mapping_size) float32
    """
    if x.ndim == 3 and x.shape[0] == 1:
        x = jnp.squeeze(x, axis=0)
    assert x.ndim == 2, f"Expected 2D input (got {x.ndim}D input)"

    M, C = x.shape
    C_b, F = B.shape
    assert C == C_b

    # Row tile: multiple of 8, clamped so small inputs don't request an
    # oversized block.  8192 rows ~= 16 MiB of double-buffered VMEM (x-tile
    # lane-pads to 128, so it costs the same per row as the output tile).
    tile_m = max(8, min(tile_m, ((M + 7) // 8) * 8))
    grid = (pl.cdiv(M, tile_m),)

    out = pl.pallas_call(
        _gfft_kernel,
        out_shape=jax.ShapeDtypeStruct((M, F), x.dtype),
        grid_spec=pltpu.PrefetchScalarGridSpec(
            num_scalar_prefetch=0,
            grid=grid,
            in_specs=[
                # x tile: (tile_m, C) -- C equals the full array dim (K=4).
                pl.BlockSpec((tile_m, C), lambda i: (i, 0)),
                # B: full (C, F) matrix, constant block index -> resident in VMEM.
                pl.BlockSpec((C, F), lambda i: (0, 0)),
            ],
            # F equals the full array dim, so no lane padding / wrapper slice:
            # the kernel writes mapping_size columns directly.
            out_specs=pl.BlockSpec((tile_m, F), lambda i: (i, 0)),
        ),
        compiler_params=pltpu.CompilerParams(
            # Row tiles are independent -> shards across v7x's 2 TensorCores
            # whenever M > tile_m.
            dimension_semantics=("parallel",),
            # 16 MiB of tile buffers at tile_m=8192; raise the scoped limit so
            # v5e's 16 MiB default doesn't overflow, while staying well under
            # v7x's 64 MiB physical VMEM.
            vmem_limit_bytes=32 * 1024 * 1024,
        ),
    )(x, B)
    return out


if __name__ == "__main__":
    key = jax.random.PRNGKey(0)
    k_b, k_x = jax.random.split(key)

    num_input_channels = 4
    mapping_size = 93
    scale = 25.0
    num_points = 64

    # Deterministic parameter init matching torch.randn((C, mapping_size)) * scale
    B = jax.random.normal(k_b, (num_input_channels, mapping_size), dtype=jnp.float32) * scale

    # Example input consistent with forward(): leading batch dim of 1 gets squeezed.
    x = jax.random.normal(k_x, (1, num_points, num_input_channels), dtype=jnp.float32)

    y = gaussian_fourier_feature_transform(x, B)
    y = jax.block_until_ready(y)

    # Reference check in plain JAX.
    y_ref = jnp.sin(jnp.squeeze(x, axis=0) @ B)
    assert y.shape == (num_points, mapping_size)
    assert jnp.allclose(y, y_ref, atol=1e-4, rtol=1e-4), "mismatch vs reference"

    print("KERNEL_OK")
</pallas_src>

<mosaic_0001>
module attributes {stable_mosaic.version = 11 : i64} {
  func.func @_gfft_kernel(%arg0: i32, %arg1: memref<64x4xf32, #tpu.memory_space<vmem>>, %arg2: memref<4x93xf32, #tpu.memory_space<vmem>>, %arg3: memref<64x93xf32, #tpu.memory_space<vmem>>) attributes {dimension_semantics = [#tpu.dimension_semantics<parallel>], iteration_bounds = array<i64: 1>, scalar_prefetch = 0 : i64, scratch_operands = 0 : i64, tpu.core_type = #tpu.core_type<tc>, window_params = [{transform_indices = @transform_0, window_bounds = array<i64: 64, 4>}, {pipeline_mode = #tpu.pipeline_mode<synchronous>, transform_indices = @transform_1, window_bounds = array<i64: 4, 93>}, {transform_indices = @transform_2, window_bounds = array<i64: 64, 93>}]} {
    %c0 = arith.constant 0 : index
    %c0_0 = arith.constant 0 : index
    %0 = vector.load %arg1[%c0, %c0_0] : memref<64x4xf32, #tpu.memory_space<vmem>>, vector<64x4xf32>
    %c0_1 = arith.constant 0 : index
    %c0_2 = arith.constant 0 : index
    %1 = vector.load %arg2[%c0_1, %c0_2] : memref<4x93xf32, #tpu.memory_space<vmem>>, vector<4x93xf32>
    %cst = arith.constant dense<0.000000e+00> : vector<64x93xf32>
    %2 = tpu.matmul %0, %1, %cst {dimension_numbers = #tpu.dot_dimension_numbers<[1], [0], [0], [1], [0, 0, 1, 1], [], []>} : vector<64x4xf32>, vector<4x93xf32>, vector<64x93xf32> -> vector<64x93xf32>
    %3 = math.sin %2 : vector<64x93xf32>
    %c0_3 = arith.constant 0 : index
    %c0_4 = arith.constant 0 : index
    %4 = vector.load %arg3[%c0_3, %c0_4] : memref<64x93xf32, #tpu.memory_space<vmem>>, vector<64x93xf32>
    tpu.vector_store %arg3[%c0_3, %c0_4], %3 {strides = array<i32>} : memref<64x93xf32, #tpu.memory_space<vmem>>, vector<64x93xf32>,
    return
  }
  func.func @transform_0(%arg0: i32) -> (i32, i32) {
    %c0_i32 = arith.constant 0 : i32
    %c0_i32_0 = arith.constant 0 : i32
    return %arg0, %c0_i32 : i32, i32
  }
  func.func @transform_1(%arg0: i32) -> (i32, i32) {
    %c0_i32 = arith.constant 0 : i32
    %c0_i32_0 = arith.constant 0 : i32
    %c0_i32_1 = arith.constant 0 : i32
    return %c0_i32, %c0_i32_0 : i32, i32
  }
  func.func @transform_2(%arg0: i32) -> (i32, i32) {
    %c0_i32 = arith.constant 0 : i32
    %c0_i32_0 = arith.constant 0 : i32
    return %arg0, %c0_i32 : i32, i32
  }
}

</mosaic_0001>

<llo_original>
// kernel: tpu_custom_call.1
$region0: #{tpu_custom_call.1}
  #allocation0 [shape = 'u32[]', space=smem, size = 0x4, offset = 0x4, fixed_abs, tag = 'smem constant byte address 0x4 - core index']
  #allocation1 [shape = 'u32[144,128]{1,0:T(1,128)}', space=vmem, size = 0x12000, scoped, tag = 'internal scratch']
  %s0 = inlined_call_operand.vmem [shape: f32[64,4], index: 0, kind: input, shape index: {}]
  %s1 = inlined_call_operand.vmem [shape: f32[4,93], index: 1, kind: input, shape index: {}]
  %s2 = inlined_call_operand.hbm [shape: f32[64,93], index: 2, kind: output, shape index: {}]
  %s3 = sld [smem:[#allocation0]]
  $region18: #{tpu_custom_call.1} parent=0
    _
  %s5 = ssub.s32 1, %s3
  %s6 = scalar_select 0, %s5, %s3
  $region1: #{tpu_custom_call.1} parent=0
    #allocation2 [shape = 'u8[32768]{0}', space=vmem, size = 0x8000, scoped, tag = 'output window, operand 0, single buffered']
    #allocation3 [shape = 's32[1]{0}', space=sflag, size = 0x4, scoped, tag = 'scoped memory for tpu_custom_call.1']
    %7 = vsyncpa [#allocation3], 0
    // Predicated region
    $region2: #{tpu_custom_call.1} parent=1 // pred_check
      _
    $region3: #{tpu_custom_call.1} parent=1 // pred_check_branch
      %9 = sbr.rel (0) target = $region5
    $region4: #{tpu_custom_call.1} parent=1 // pred_region
      _
    $region5: #{tpu_custom_call.1} parent=1 // pred_fallthru
      _
    // Predicated region
    $region6: #{tpu_custom_call.1} parent=1 // pred_check
      _
    $region7: #{tpu_custom_call.1} parent=1 // pred_check_branch
      %11 = sbr.rel (0) target = $region9
    $region8: #{tpu_custom_call.1} parent=1 // pred_region
      _
    $region9: #{tpu_custom_call.1} parent=1 // pred_fallthru
      _
    %v12 = vld [vmem:[%s0] sm:$0xff]
    %v13 = vld [vmem:[%s0 + $0x8] sm:$0xff]
    %v14 = vld [vmem:[%s0 + $0x10] sm:$0xff]
    %v15 = vld [vmem:[%s0 + $0x18] sm:$0xff]
    %v16 = vld [vmem:[%s0 + $0x20] sm:$0xff]
    %v17 = vld [vmem:[%s0 + $0x28] sm:$0xff]
    %v18 = vld [vmem:[%s0 + $0x30] sm:$0xff]
    %v19 = vld [vmem:[%s0 + $0x38] sm:$0xff]
    %v20 = vld [vmem:[%s1] sm:$0xf]
    %vm21 = vcmask 31744
    %v23 = vsel %vm21, %v12, 0
    %v26 = vsel %vm21, %v13, 0
    %v29 = vsel %vm21, %v14, 0
    %v32 = vsel %vm21, %v15, 0
    %v35 = vsel %vm21, %v16, 0
    %v38 = vsel %vm21, %v17, 0
    %v41 = vsel %vm21, %v18, 0
    %v44 = vsel %vm21, %v19, 0
    %vm46 = vcmask 1043456
    %v48 = vsel %vm46, %v20, 0
    %50 = vmatprep.subr.mxu0 0.0
    %51 = vmatpush1.msra.mxu0 %v48
    %52 = vmatprep.subr.mxu0 0.0
    %53 = vmatpush1.msra.mxu0 0.0
    %54 = vmatprep.subr.mxu0 0.0
    %55 = vmatpush1.msra.mxu0 0.0
    %56 = vmatprep.subr.mxu0 0.0
    %57 = vmatpush1.msra.mxu0 0.0
    %58 = vmatprep.subr.mxu0 0.0
    %59 = vmatpush1.msra.mxu0 0.0
    %60 = vmatprep.subr.mxu0 0.0
    %61 = vmatpush1.msra.mxu0 0.0
    %62 = vmatprep.subr.mxu0 0.0
    %63 = vmatpush1.msra.mxu0 0.0
    %64 = vmatprep.subr.mxu0 0.0
    %65 = vmatpush1.msra.mxu0 0.0
    %66 = vmatprep.subr.mxu0 0.0
    %67 = vmatpush1.msra.mxu0 0.0
    %68 = vmatprep.subr.mxu0 0.0
    %69 = vmatpush1.msra.mxu0 0.0
    %70 = vmatprep.subr.mxu0 0.0
    %71 = vmatpush1.msra.mxu0 0.0
    %72 = vmatprep.subr.mxu0 0.0
    %73 = vmatpush1.msra.mxu0 0.0
    %74 = vmatprep.subr.mxu0 0.0
    %75 = vmatpush1.msra.mxu0 0.0
    %76 = vmatprep.subr.mxu0 0.0
    %77 = vmatpush1.msra.mxu0 0.0
    %78 = vmatprep.subr.mxu0 0.0
    %79 = vmatpush1.msra.mxu0 0.0
    %80 = vmatprep.subr.mxu0 0.0
    %81 = vmatpush1.msra.mxu0 0.0
    %82 = vmatprep.subr.mxu0 0.0
    %83 = vmatpush1.msra.mxu0 0.0
    %84 = vmatprep.subr.mxu0 0.0
    %85 = vmatpush1.msra.mxu0 0.0
    %86 = vmatprep.subr.mxu0 0.0
    %87 = vmatpush1.msra.mxu0 0.0
    %88 = vmatprep.subr.mxu0 0.0
    %89 = vmatpush1.msra.mxu0 0.0
    %90 = vmatprep.subr.mxu0 0.0
    %91 = vmatpush1.msra.mxu0 0.0
    %92 = vmatprep.subr.mxu0 0.0
    %93 = vmatpush1.msra.mxu0 0.0
    %94 = vmatprep.subr.mxu0 0.0
    %95 = vmatpush1.msra.mxu0 0.0
    %96 = vmatprep.subr.mxu0 0.0
    %97 = vmatpush1.msra.mxu0 0.0
    %98 = vmatprep.subr.mxu0 0.0
    %99 = vmatpush1.msra.mxu0 0.0
    %100 = vmatprep.subr.mxu0 0.0
    %101 = vmatpush1.msra.mxu0 0.0
    %102 = vmatprep.subr.mxu0 0.0
    %103 = vmatpush1.msra.mxu0 0.0
    %104 = vmatprep.subr.mxu0 0.0
    %105 = vmatpush1.msra.mxu0 0.0
    %106 = vmatprep.subr.mxu0 0.0
    %107 = vmatpush1.msra.mxu0 0.0
    %108 = vmatprep.subr.mxu0 0.0
    %109 = vmatpush1.msra.mxu0 0.0
    %110 = vmatprep.subr.mxu0 0.0
    %111 = vmatpush1.msra.mxu0 0.0
    %112 = vmatprep.subr.mxu0 0.0
    %113 = vmatpush1.msra.mxu0 0.0
    %114 = vmatprep.mubr.f32.mxu0 0.0
    %115 = vmatmul.mubr.f32.gmra.mrb[0].mxu0 %v23
    %v116 = vpop.f32.mrb[0].mxu0
    %v117 = vadd.f32 0.0, %v116
    %v118 = vpop.f32.mrb[0].mxu0
    %119 = vmatprep.mubr.f32.mxu0 0.0
    %120 = vmatmul.mubr.f32.gmra.mrb[0].mxu0 %v26
    %v121 = vpop.f32.mrb[0].mxu0
    %v122 = vadd.f32 0.0, %v121
    %v123 = vpop.f32.mrb[0].mxu0
    %124 = vmatprep.mubr.f32.mxu0 0.0
    %125 = vmatmul.mubr.f32.gmra.mrb[0].mxu0 %v29
    %v126 = vpop.f32.mrb[0].mxu0
    %v127 = vadd.f32 0.0, %v126
    %v128 = vpop.f32.mrb[0].mxu0
    %129 = vmatprep.mubr.f32.mxu0 0.0
    %130 = vmatmul.mubr.f32.gmra.mrb[0].mxu0 %v32
    %v131 = vpop.f32.mrb[0].mxu0
    %v132 = vadd.f32 0.0, %v131
    %v133 = vpop.f32.mrb[0].mxu0
    %134 = vmatprep.mubr.f32.mxu0 0.0
    %135 = vmatmul.mubr.f32.gmra.mrb[0].mxu0 %v35
    %v136 = vpop.f32.mrb[0].mxu0
    %v137 = vadd.f32 0.0, %v136
    %v138 = vpop.f32.mrb[0].mxu0
    %139 = vmatprep.mubr.f32.mxu0 0.0
    %140 = vmatmul.mubr.f32.gmra.mrb[0].mxu0 %v38
    %v141 = vpop.f32.mrb[0].mxu0
    %v142 = vadd.f32 0.0, %v141
    %v143 = vpop.f32.mrb[0].mxu0
    %144 = vmatprep.mubr.f32.mxu0 0.0
    %145 = vmatmul.mubr.f32.gmra.mrb[0].mxu0 %v41
    %v146 = vpop.f32.mrb[0].mxu0
    %v147 = vadd.f32 0.0, %v146
    %v148 = vpop.f32.mrb[0].mxu0
    %149 = vmatprep.mubr.f32.mxu0 0.0
    %150 = vmatmul.mubr.f32.gmra.mrb[0].mxu0 %v44
    %v151 = vpop.f32.mrb[0].mxu0
    %v152 = vadd.f32 0.0, %v151
    %v153 = vpop.f32.mrb[0].mxu0
    %154 = vdwg.mxu0
    %v155 = vand.u32 2147483647, %v117
    %vm156 = vcmp.le.f32.partialorder %v155, 0.7853982
    %vm157 = vcmp.lt.s32.totalorder %v117, 0
    %v158 = vand.u32 %v117, 2139095040
    %v159 = vshrl.u32 %v158, 23
    %v160 = vsub.s32 %v159, 127
    %v161 = vand.u32 2147483647, %v117
    %v162 = vand.u32 %v161, 8388607
    %v163 = vor.u32 %v162, 8388608
    %v164 = vsub.s32 0, %v163
    %v165 = vadd.s32 %v160, 1
    %vm166 = vcmp.gt.s32.totalorder %v165, 0
    %v167 = vsel %vm166, %v165, 0
    %v168 = vshrl.u32 %v167, 5
    %v169 = vand.u32 %v167, 31
    %v170 = vsub.s32 32, %v169
    %v171 = vshrl.u32 683565275, %v170
    %v172 = vshll.u32 683565275, %v169
    %v173 = vshrl.u32 2475754826, %v170
    %v174 = vor.u32 %v172, %v173
    %v175 = vshll.u32 2475754826, %v169
    %v176 = vshrl.u32 2131351028, %v170
    %v177 = vor.u32 %v175, %v176
    %v178 = vshll.u32 2131351028, %v169
    %v179 = vshrl.u32 2102212464, %v170
    %v180 = vor.u32 %v178, %v179
    %v181 = vshll.u32 2102212464, %v169
    %v182 = vshrl.u32 920167782, %v170
    %v183 = vor.u32 %v181, %v182
    %v184 = vshll.u32 920167782, %v169
    %v185 = vshrl.u32 1326507024, %v170
    %v186 = vor.u32 %v184, %v185
    %vm187 = vcmp.lt.s32.totalorder %v168, 1
    %vm188 = vcmp.lt.s32.totalorder %v168, 2
    %vm189 = vcmp.lt.s32.totalorder %v168, 3
    %vm190 = vcmp.lt.s32.totalorder %v168, 4
    %v191 = vsel %vm187, %v171, %v174
    %v192 = vsel %vm190, %v180, 2102212464
    %v193 = vsel %vm189, %v177, %v192
    %v194 = vsel %vm188, %v191, %v193
    %v195 = vsel %vm187, %v174, %v177
    %v196 = vsel %vm190, %v183, 920167782
    %v197 = vsel %vm189, %v180, %v196
    %v198 = vsel %vm188, %v195, %v197
    %v199 = vsel %vm187, %v177, %v180
    %v200 = vsel %vm190, %v186, 1326507024
    %v201 = vsel %vm189, %v183, %v200
    %v202 = vsel %vm188, %v199, %v201
    %v203 = vshll.u32 %v163, 8
    %v204 = vmul.u32.u64.compose %v203, %v202
    %v205 = vextract.low.u32 %v204
    %v206 = vextract.high.u32 %v204
    %v207 = vmul.u32.u64.compose %v203, %v198
    %v208 = vextract.low.u32 %v207
    %v209 = vextract.high.u32 %v207
    %v210 = vmul.u32 %v203, %v194
    %v211 = vadd.s32 %v206, %v208
    %vm212 = vc.u32 %v206, %v208
    %v213 = vadd.s32 %v209, 1
    %v214 = vsel %vm212, %v213, %v209
    %v215 = vadd.s32 %v210, %v214
    %v216 = vadd.s32 %v215, 536870912
    %v217 = vshrl.u32 %v216, 30
    %v218 = vshll.u32 %v217, 30
    %v219 = vsub.s32 %v215, %v218
    %vm220 = vcmp.lt.s32.totalorder %v219, 0
    %v221 = vsub.s32 0, %v219
    %v222 = vsel %vm220, %v221, %v219
    %v223 = vclz %v222
    %v224 = vsub.s32 %v223, 2
    %vm225 = vcmp.gt.s32.totalorder 0, %v224
    %v226 = vsel %vm225, 0, %v224
    %v227 = vsub.s32 32, %v226
    %v228 = vshll.u32 %v219, %v226
    %v229 = vshrl.u32 %v211, %v227
    %v230 = vor.u32 %v228, %v229
    %v231 = vsub.s32 4294967266, %v226
    %v232 = vadd.s32 %v231, 127
    %v233 = vshll.u32 %v232, 23
    %v234 = vor.u32 4788187, %v233
    %v235 = vand.u32 2147483647, %v234
    %v237 = vcvt.s32.f32 %v230
    %v238 = vmul.f32 %v237, %v235
    %v239 = vxor.u32 %v238, 2147483648
    %v240 = vsel %vm157, %v239, %v238
    %v241 = vsub.s32 4, %v217
    %v242 = vsel %vm157, %v241, %v217
    %v243 = vsel %vm156, %v117, %v240
    %v244 = vsel %vm156, 0, %v242
    %v245 = vcosq.f32.pop %v243
    %v246 = vsinq.f32.pop %v243
    %vm247 = vweird.f32 %v117
    %v248 = vadd.s32 %v244, 3
    %v249 = vand.u32 %v248, 3
    %vm250 = vcmp.lt.s32.totalorder %v249, 2
    %vm251 = vcmp.eq.s32.totalorder %v249, 0
    %v252 = vxor.u32 %v246, 2147483648
    %v253 = vsel %vm251, %v245, %v252
    %vm254 = vcmp.eq.s32.totalorder %v249, 2
    %v255 = vxor.u32 %v245, 2147483648
    %v256 = vsel %vm254, %v255, %v246
    %v257 = vsel %vm250, %v253, %v256
    %v258 = vsel %vm247, nan, %v257
    %v259 = vand.u32 2147483647, %v122
    %vm260 = vcmp.le.f32.partialorder %v259, 0.7853982
    %vm261 = vcmp.lt.s32.totalorder %v122, 0
    %v262 = vand.u32 %v122, 2139095040
    %v263 = vshrl.u32 %v262, 23
    %v264 = vsub.s32 %v263, 127
    %v265 = vand.u32 2147483647, %v122
    %v266 = vand.u32 %v265, 8388607
    %v267 = vor.u32 %v266, 8388608
    %v268 = vsub.s32 0, %v267
    %v269 = vadd.s32 %v264, 1
    %vm270 = vcmp.gt.s32.totalorder %v269, 0
    %v271 = vsel %vm270, %v269, 0
    %v272 = vshrl.u32 %v271, 5
    %v273 = vand.u32 %v271, 31
    %v274 = vsub.s32 32, %v273
    %v275 = vshrl.u32 683565275, %v274
    %v276 = vshll.u32 683565275, %v273
    %v277 = vshrl.u32 2475754826, %v274
    %v278 = vor.u32 %v276, %v277
    %v279 = vshll.u32 2475754826, %v273
    %v280 = vshrl.u32 2131351028, %v274
    %v281 = vor.u32 %v279, %v280
    %v282 = vshll.u32 2131351028, %v273
    %v283 = vshrl.u32 2102212464, %v274
    %v284 = vor.u32 %v282, %v283
    %v285 = vshll.u32 2102212464, %v273
    %v286 = vshrl.u32 920167782, %v274
    %v287 = vor.u32 %v285, %v286
    %v288 = vshll.u32 920167782, %v273
    %v289 = vshrl.u32 1326507024, %v274
    %v290 = vor.u32 %v288, %v289
    %vm291 = vcmp.lt.s32.totalorder %v272, 1
    %vm292 = vcmp.lt.s32.totalorder %v272, 2
    %vm293 = vcmp.lt.s32.totalorder %v272, 3
    %vm294 = vcmp.lt.s32.totalorder %v272, 4
    %v295 = vsel %vm291, %v275, %v278
    %v296 = vsel %vm294, %v284, 2102212464
    %v297 = vsel %vm293, %v281, %v296
    %v298 = vsel %vm292, %v295, %v297
    %v299 = vsel %vm291, %v278, %v281
    %v300 = vsel %vm294, %v287, 920167782
    %v301 = vsel %vm293, %v284, %v300
    %v302 = vsel %vm292, %v299, %v301
    %v303 = vsel %vm291, %v281, %v284
    %v304 = vsel %vm294, %v290, 1326507024
    %v305 = vsel %vm293, %v287, %v304
    %v306 = vsel %vm292, %v303, %v305
    %v307 = vshll.u32 %v267, 8
    %v308 = vmul.u32.u64.compose %v307, %v306
    %v309 = vextract.low.u32 %v308
    %v310 = vextract.high.u32 %v308
    %v311 = vmul.u32.u64.compose %v307, %v302
    %v312 = vextract.low.u32 %v311
    %v313 = vextract.high.u32 %v311
    %v314 = vmul.u32 %v307, %v298
    %v315 = vadd.s32 %v310, %v312
    %vm316 = vc.u32 %v310, %v312
    %v317 = vadd.s32 %v313, 1
    %v318 = vsel %vm316, %v317, %v313
    %v319 = vadd.s32 %v314, %v318
    %v320 = vadd.s32 %v319, 536870912
    %v321 = vshrl.u32 %v320, 30
    %v322 = vshll.u32 %v321, 30
    %v323 = vsub.s32 %v319, %v322
    %vm324 = vcmp.lt.s32.totalorder %v323, 0
    %v325 = vsub.s32 0, %v323
    %v326 = vsel %vm324, %v325, %v323
    %v327 = vclz %v326
    %v328 = vsub.s32 %v327, 2
    %vm329 = vcmp.gt.s32.totalorder 0, %v328
    %v330 = vsel %vm329, 0, %v328
    %v331 = vsub.s32 32, %v330
    %v332 = vshll.u32 %v323, %v330
    %v333 = vshrl.u32 %v315, %v331
    %v334 = vor.u32 %v332, %v333
    %v335 = vsub.s32 4294967266, %v330
    %v336 = vadd.s32 %v335, 127
    %v337 = vshll.u32 %v336, 23
    %v338 = vor.u32 4788187, %v337
    %v339 = vand.u32 2147483647, %v338
    %v341 = vcvt.s32.f32 %v334
    %v342 = vmul.f32 %v341, %v339
    %v343 = vxor.u32 %v342, 2147483648
    %v344 = vsel %vm261, %v343, %v342
    %v345 = vsub.s32 4, %v321
    %v346 = vsel %vm261, %v345, %v321
    %v347 = vsel %vm260, %v122, %v344
    %v348 = vsel %vm260, 0, %v346
    %v349 = vcosq.f32.pop %v347
    %v350 = vsinq.f32.pop %v347
    %vm351 = vweird.f32 %v122
    %v352 = vadd.s32 %v348, 3
    %v353 = vand.u32 %v352, 3
    %vm354 = vcmp.lt.s32.totalorder %v353, 2
    %vm355 = vcmp.eq.s32.totalorder %v353, 0
    %v356 = vxor.u32 %v350, 2147483648
    %v357 = vsel %vm355, %v349, %v356
    %vm358 = vcmp.eq.s32.totalorder %v353, 2
    %v359 = vxor.u32 %v349, 2147483648
    %v360 = vsel %vm358, %v359, %v350
    %v361 = vsel %vm354, %v357, %v360
    %v362 = vsel %vm351, nan, %v361
    %v363 = vand.u32 2147483647, %v127
    %vm364 = vcmp.le.f32.partialorder %v363, 0.7853982
    %vm365 = vcmp.lt.s32.totalorder %v127, 0
    %v366 = vand.u32 %v127, 2139095040
    %v367 = vshrl.u32 %v366, 23
    %v368 = vsub.s32 %v367, 127
    %v369 = vand.u32 2147483647, %v127
    %v370 = vand.u32 %v369, 8388607
    %v371 = vor.u32 %v370, 8388608
    %v372 = vsub.s32 0, %v371
    %v373 = vadd.s32 %v368, 1
    %vm374 = vcmp.gt.s32.totalorder %v373, 0
    %v375 = vsel %vm374, %v373, 0
    %v376 = vshrl.u32 %v375, 5
    %v377 = vand.u32 %v375, 31
    %v378 = vsub.s32 32, %v377
    %v379 = vshrl.u32 683565275, %v378
    %v380 = vshll.u32 683565275, %v377
    %v381 = vshrl.u32 2475754826, %v378
    %v382 = vor.u32 %v380, %v381
    %v383 = vshll.u32 2475754826, %v377
    %v384 = vshrl.u32 2131351028, %v378
    %v385 = vor.u32 %v383, %v384
    %v386 = vshll.u32 2131351028, %v377
    %v387 = vshrl.u32 2102212464, %v378
    %v388 = vor.u32 %v386, %v387
    %v389 = vshll.u32 2102212464, %v377
    %v390 = vshrl.u32 920167782, %v378
    %v391 = vor.u32 %v389, %v390
    %v392 = vshll.u32 920167782, %v377
    %v393 = vshrl.u32 1326507024, %v378
    %v394 = vor.u32 %v392, %v393
    %vm395 = vcmp.lt.s32.totalorder %v376, 1
    %vm396 = vcmp.lt.s32.totalorder %v376, 2
    %vm397 = vcmp.lt.s32.totalorder %v376, 3
    %vm398 = vcmp.lt.s32.totalorder %v376, 4
    %v399 = vsel %vm395, %v379, %v382
    %v400 = vsel %vm398, %v388, 2102212464
    %v401 = vsel %vm397, %v385, %v400
    %v402 = vsel %vm396, %v399, %v401
    %v403 = vsel %vm395, %v382, %v385
    %v404 = vsel %vm398, %v391, 920167782
    %v405 = vsel %vm397, %v388, %v404
    %v406 = vsel %vm396, %v403, %v405
    %v407 = vsel %vm395, %v385, %v388
    %v408 = vsel %vm398, %v394, 1326507024
    %v409 = vsel %vm397, %v391, %v408
    %v410 = vsel %vm396, %v407, %v409
    %v411 = vshll.u32 %v371, 8
    %v412 = vmul.u32.u64.compose %v411, %v410
    %v413 = vextract.low.u32 %v412
    %v414 = vextract.high.u32 %v412
    %v415 = vmul.u32.u64.compose %v411, %v406
    %v416 = vextract.low.u32 %v415
    %v417 = vextract.high.u32 %v415
    %v418 = vmul.u32 %v411, %v402
    %v419 = vadd.s32 %v414, %v416
    %vm420 = vc.u32 %v414, %v416
    %v421 = vadd.s32 %v417, 1
    %v422 = vsel %vm420, %v421, %v417
    %v423 = vadd.s32 %v418, %v422
    %v424 = vadd.s32 %v423, 536870912
    %v425 = vshrl.u32 %v424, 30
    %v426 = vshll.u32 %v425, 30
    %v427 = vsub.s32 %v423, %v426
    %vm428 = vcmp.lt.s32.totalorder %v427, 0
    %v429 = vsub.s32 0, %v427
    %v430 = vsel %vm428, %v429, %v427
    %v431 = vclz %v430
    %v432 = vsub.s32 %v431, 2
    %vm433 = vcmp.gt.s32.totalorder 0, %v432
    %v434 = vsel %vm433, 0, %v432
    %v435 = vsub.s32 32, %v434
    %v436 = vshll.u32 %v427, %v434
    %v437 = vshrl.u32 %v419, %v435
    %v438 = vor.u32 %v436, %v437
    %v439 = vsub.s32 4294967266, %v434
    %v440 = vadd.s32 %v439, 127
    %v441 = vshll.u32 %v440, 23
    %v442 = vor.u32 4788187, %v441
    %v443 = vand.u32 2147483647, %v442
    %v445 = vcvt.s32.f32 %v438
    %v446 = vmul.f32 %v445, %v443
    %v447 = vxor.u32 %v446, 2147483648
    %v448 = vsel %vm365, %v447, %v446
    %v449 = vsub.s32 4, %v425
    %v450 = vsel %vm365, %v449, %v425
    %v451 = vsel %vm364, %v127, %v448
    %v452 = vsel %vm364, 0, %v450
    %v453 = vcosq.f32.pop %v451
    %v454 = vsinq.f32.pop %v451
    %vm455 = vweird.f32 %v127
    %v456 = vadd.s32 %v452, 3
    %v457 = vand.u32 %v456, 3
    %vm458 = vcmp.lt.s32.totalorder %v457, 2
    %vm459 = vcmp.eq.s32.totalorder %v457, 0
    %v460 = vxor.u32 %v454, 2147483648
    %v461 = vsel %vm459, %v453, %v460
    %vm462 = vcmp.eq.s32.totalorder %v457, 2
    %v463 = vxor.u32 %v453, 2147483648
    %v464 = vsel %vm462, %v463, %v454
    %v465 = vsel %vm458, %v461, %v464
    %v466 = vsel %vm455, nan, %v465
    %v467 = vand.u32 2147483647, %v132
    %vm468 = vcmp.le.f32.partialorder %v467, 0.7853982
    %vm469 = vcmp.lt.s32.totalorder %v132, 0
    %v470 = vand.u32 %v132, 2139095040
    %v471 = vshrl.u32 %v470, 23
    %v472 = vsub.s32 %v471, 127
    %v473 = vand.u32 2147483647, %v132
    %v474 = vand.u32 %v473, 8388607
    %v475 = vor.u32 %v474, 8388608
    %v476 = vsub.s32 0, %v475
    %v477 = vadd.s32 %v472, 1
    %vm478 = vcmp.gt.s32.totalorder %v477, 0
    %v479 = vsel %vm478, %v477, 0
    %v480 = vshrl.u32 %v479, 5
    %v481 = vand.u32 %v479, 31
    %v482 = vsub.s32 32, %v481
    %v483 = vshrl.u32 683565275, %v482
    %v484 = vshll.u32 683565275, %v481
    %v485 = vshrl.u32 2475754826, %v482
    %v486 = vor.u32 %v484, %v485
    %v487 = vshll.u32 2475754826, %v481
    %v488 = vshrl.u32 2131351028, %v482
    %v489 = vor.u32 %v487, %v488
    %v490 = vshll.u32 2131351028, %v481
    %v491 = vshrl.u32 2102212464, %v482
    %v492 = vor.u32 %v490, %v491
    %v493 = vshll.u32 2102212464, %v481
    %v494 = vshrl.u32 920167782, %v482
    %v495 = vor.u32 %v493, %v494
    %v496 = vshll.u32 920167782, %v481
    %v497 = vshrl.u32 1326507024, %v482
    %v498 = vor.u32 %v496, %v497
    %vm499 = vcmp.lt.s32.totalorder %v480, 1
    %vm500 = vcmp.lt.s32.totalorder %v480, 2
    %vm501 = vcmp.lt.s32.totalorder %v480, 3
    %vm502 = vcmp.lt.s32.totalorder %v480, 4
    %v503 = vsel %vm499, %v483, %v486
    %v504 = vsel %vm502, %v492, 2102212464
    %v505 = vsel %vm501, %v489, %v504
    %v506 = vsel %vm500, %v503, %v505
    %v507 = vsel %vm499, %v486, %v489
    %v508 = vsel %vm502, %v495, 920167782
    %v509 = vsel %vm501, %v492, %v508
    %v510 = vsel %vm500, %v507, %v509
    %v511 = vsel %vm499, %v489, %v492
    %v512 = vsel %vm502, %v498, 1326507024
    %v513 = vsel %vm501, %v495, %v512
    %v514 = vsel %vm500, %v511, %v513
    %v515 = vshll.u32 %v475, 8
    %v516 = vmul.u32.u64.compose %v515, %v514
    %v517 = vextract.low.u32 %v516
    %v518 = vextract.high.u32 %v516
    %v519 = vmul.u32.u64.compose %v515, %v510
    %v520 = vextract.low.u32 %v519
    %v521 = vextract.high.u32 %v519
    %v522 = vmul.u32 %v515, %v506
    %v523 = vadd.s32 %v518, %v520
    %vm524 = vc.u32 %v518, %v520
    %v525 = vadd.s32 %v521, 1
    %v526 = vsel %vm524, %v525, %v521
    %v527 = vadd.s32 %v522, %v526
    %v528 = vadd.s32 %v527, 536870912
    %v529 = vshrl.u32 %v528, 30
    %v530 = vshll.u32 %v529, 30
    %v531 = vsub.s32 %v527, %v530
    %vm532 = vcmp.lt.s32.totalorder %v531, 0
    %v533 = vsub.s32 0, %v531
    %v534 = vsel %vm532, %v533, %v531
    %v535 = vclz %v534
    %v536 = vsub.s32 %v535, 2
    %vm537 = vcmp.gt.s32.totalorder 0, %v536
    %v538 = vsel %vm537, 0, %v536
    %v539 = vsub.s32 32, %v538
    %v540 = vshll.u32 %v531, %v538
    %v541 = vshrl.u32 %v523, %v539
    %v542 = vor.u32 %v540, %v541
    %v543 = vsub.s32 4294967266, %v538
    %v544 = vadd.s32 %v543, 127
    %v545 = vshll.u32 %v544, 23
    %v546 = vor.u32 4788187, %v545
    %v547 = vand.u32 2147483647, %v546
    %v549 = vcvt.s32.f32 %v542
    %v550 = vmul.f32 %v549, %v547
    %v551 = vxor.u32 %v550, 2147483648
    %v552 = vsel %vm469, %v551, %v550
    %v553 = vsub.s32 4, %v529
    %v554 = vsel %vm469, %v553, %v529
    %v555 = vsel %vm468, %v132, %v552
    %v556 = vsel %vm468, 0, %v554
    %v557 = vcosq.f32.pop %v555
    %v558 = vsinq.f32.pop %v555
    %vm559 = vweird.f32 %v132
    %v560 = vadd.s32 %v556, 3
    %v561 = vand.u32 %v560, 3
    %vm562 = vcmp.lt.s32.totalorder %v561, 2
    %vm563 = vcmp.eq.s32.totalorder %v561, 0
    %v564 = vxor.u32 %v558, 2147483648
    %v565 = vsel %vm563, %v557, %v564
    %vm566 = vcmp.eq.s32.totalorder %v561, 2
    %v567 = vxor.u32 %v557, 2147483648
    %v568 = vsel %vm566, %v567, %v558
    %v569 = vsel %vm562, %v565, %v568
    %v570 = vsel %vm559, nan, %v569
    %v571 = vand.u32 2147483647, %v137
    %vm572 = vcmp.le.f32.partialorder %v571, 0.7853982
    %vm573 = vcmp.lt.s32.totalorder %v137, 0
    %v574 = vand.u32 %v137, 2139095040
    %v575 = vshrl.u32 %v574, 23
    %v576 = vsub.s32 %v575, 127
    %v577 = vand.u32 2147483647, %v137
    %v578 = vand.u32 %v577, 8388607
    %v579 = vor.u32 %v578, 8388608
    %v580 = vsub.s32 0, %v579
    %v581 = vadd.s32 %v576, 1
    %vm582 = vcmp.gt.s32.totalorder %v581, 0
    %v583 = vsel %vm582, %v581, 0
    %v584 = vshrl.u32 %v583, 5
    %v585 = vand.u32 %v583, 31
    %v586 = vsub.s32 32, %v585
    %v587 = vshrl.u32 683565275, %v586
    %v588 = vshll.u32 683565275, %v585
    %v589 = vshrl.u32 2475754826, %v586
    %v590 = vor.u32 %v588, %v589
    %v591 = vshll.u32 2475754826, %v585
    %v592 = vshrl.u32 2131351028, %v586
    %v593 = vor.u32 %v591, %v592
    %v594 = vshll.u32 2131351028, %v585
    %v595 = vshrl.u32 2102212464, %v586
    %v596 = vor.u32 %v594, %v595
    %v597 = vshll.u32 2102212464, %v585
    %v598 = vshrl.u32 920167782, %v586
    %v599 = vor.u32 %v597, %v598
    %v600 = vshll.u32 920167782, %v585
    %v601 = vshrl.u32 1326507024, %v586
    %v602 = vor.u32 %v600, %v601
    %vm603 = vcmp.lt.s32.totalorder %v584, 1
    %vm604 = vcmp.lt.s32.totalorder %v584, 2
    %vm605 = vcmp.lt.s32.totalorder %v584, 3
    %vm606 = vcmp.lt.s32.totalorder %v584, 4
    %v607 = vsel %vm603, %v587, %v590
    %v608 = vsel %vm606, %v596, 2102212464
    %v609 = vsel %vm605, %v593, %v608
    %v610 = vsel %vm604, %v607, %v609
    %v611 = vsel %vm603, %v590, %v593
    %v612 = vsel %vm606, %v599, 920167782
    %v613 = vsel %vm605, %v596, %v612
    %v614 = vsel %vm604, %v611, %v613
    %v615 = vsel %vm603, %v593, %v596
    %v616 = vsel %vm606, %v602, 1326507024
    %v617 = vsel %vm605, %v599, %v616
    %v618 = vsel %vm604, %v615, %v617
    %v619 = vshll.u32 %v579, 8
    %v620 = vmul.u32.u64.compose %v619, %v618
    %v621 = vextract.low.u32 %v620
    %v622 = vextract.high.u32 %v620
    %v623 = vmul.u32.u64.compose %v619, %v614
    %v624 = vextract.low.u32 %v623
    %v625 = vextract.high.u32 %v623
    %v626 = vmul.u32 %v619, %v610
    %v627 = vadd.s32 %v622, %v624
    %vm628 = vc.u32 %v622, %v624
    %v629 = vadd.s32 %v625, 1
    %v630 = vsel %vm628, %v629, %v625
    %v631 = vadd.s32 %v626, %v630
    %v632 = vadd.s32 %v631, 536870912
    %v633 = vshrl.u32 %v632, 30
    %v634 = vshll.u32 %v633, 30
    %v635 = vsub.s32 %v631, %v634
    %vm636 = vcmp.lt.s32.totalorder %v635, 0
    %v637 = vsub.s32 0, %v635
    %v638 = vsel %vm636, %v637, %v635
    %v639 = vclz %v638
    %v640 = vsub.s32 %v639, 2
    %vm641 = vcmp.gt.s32.totalorder 0, %v640
    %v642 = vsel %vm641, 0, %v640
    %v643 = vsub.s32 32, %v642
    %v644 = vshll.u32 %v635, %v642
    %v645 = vshrl.u32 %v627, %v643
    %v646 = vor.u32 %v644, %v645
    %v647 = vsub.s32 4294967266, %v642
    %v648 = vadd.s32 %v647, 127
    %v649 = vshll.u32 %v648, 23
    %v650 = vor.u32 4788187, %v649
    %v651 = vand.u32 2147483647, %v650
    %v653 = vcvt.s32.f32 %v646
    %v654 = vmul.f32 %v653, %v651
    %v655 = vxor.u32 %v654, 2147483648
    %v656 = vsel %vm573, %v655, %v654
    %v657 = vsub.s32 4, %v633
    %v658 = vsel %vm573, %v657, %v633
    %v659 = vsel %vm572, %v137, %v656
    %v660 = vsel %vm572, 0, %v658
    %v661 = vcosq.f32.pop %v659
    %v662 = vsinq.f32.pop %v659
    %vm663 = vweird.f32 %v137
    %v664 = vadd.s32 %v660, 3
    %v665 = vand.u32 %v664, 3
    %vm666 = vcmp.lt.s32.totalorder %v665, 2
    %vm667 = vcmp.eq.s32.totalorder %v665, 0
    %v668 = vxor.u32 %v662, 2147483648
    %v669 = vsel %vm667, %v661, %v668
    %vm670 = vcmp.eq.s32.totalorder %v665, 2
    %v671 = vxor.u32 %v661, 2147483648
    %v672 = vsel %vm670, %v671, %v662
    %v673 = vsel %vm666, %v669, %v672
    %v674 = vsel %vm663, nan, %v673
    %v675 = vand.u32 2147483647, %v142
    %vm676 = vcmp.le.f32.partialorder %v675, 0.7853982
    %vm677 = vcmp.lt.s32.totalorder %v142, 0
    %v678 = vand.u32 %v142, 2139095040
    %v679 = vshrl.u32 %v678, 23
    %v680 = vsub.s32 %v679, 127
    %v681 = vand.u32 2147483647, %v142
    %v682 = vand.u32 %v681, 8388607
    %v683 = vor.u32 %v682, 8388608
    %v684 = vsub.s32 0, %v683
    %v685 = vadd.s32 %v680, 1
    %vm686 = vcmp.gt.s32.totalorder %v685, 0
    %v687 = vsel %vm686, %v685, 0
    %v688 = vshrl.u32 %v687, 5
    %v689 = vand.u32 %v687, 31
    %v690 = vsub.s32 32, %v689
    %v691 = vshrl.u32 683565275, %v690
    %v692 = vshll.u32 683565275, %v689
    %v693 = vshrl.u32 2475754826, %v690
    %v694 = vor.u32 %v692, %v693
    %v695 = vshll.u32 2475754826, %v689
    %v696 = vshrl.u32 2131351028, %v690
    %v697 = vor.u32 %v695, %v696
    %v698 = vshll.u32 2131351028, %v689
    %v699 = vshrl.u32 2102212464, %v690
    %v700 = vor.u32 %v698, %v699
    %v701 = vshll.u32 2102212464, %v689
    %v702 = vshrl.u32 920167782, %v690
    %v703 = vor.u32 %v701, %v702
    %v704 = vshll.u32 920167782, %v689
    %v705 = vshrl.u32 1326507024, %v690
    %v706 = vor.u32 %v704, %v705
    %vm707 = vcmp.lt.s32.totalorder %v688, 1
    %vm708 = vcmp.lt.s32.totalorder %v688, 2
    %vm709 = vcmp.lt.s32.totalorder %v688, 3
    %vm710 = vcmp.lt.s32.totalorder %v688, 4
    %v711 = vsel %vm707, %v691, %v694
    %v712 = vsel %vm710, %v700, 2102212464
    %v713 = vsel %vm709, %v697, %v712
    %v714 = vsel %vm708, %v711, %v713
    %v715 = vsel %vm707, %v694, %v697
    %v716 = vsel %vm710, %v703, 920167782
    %v717 = vsel %vm709, %v700, %v716
    %v718 = vsel %vm708, %v715, %v717
    %v719 = vsel %vm707, %v697, %v700
    %v720 = vsel %vm710, %v706, 1326507024
    %v721 = vsel %vm709, %v703, %v720
    %v722 = vsel %vm708, %v719, %v721
    %v723 = vshll.u32 %v683, 8
    %v724 = vmul.u32.u64.compose %v723, %v722
    %v725 = vextract.low.u32 %v724
    %v726 = vextract.high.u32 %v724
    %v727 = vmul.u32.u64.compose %v723, %v718
    %v728 = vextract.low.u32 %v727
    %v729 = vextract.high.u32 %v727
    %v730 = vmul.u32 %v723, %v714
    %v731 = vadd.s32 %v726, %v728
    %vm732 = vc.u32 %v726, %v728
    %v733 = vadd.s32 %v729, 1
    %v734 = vsel %vm732, %v733, %v729
    %v735 = vadd.s32 %v730, %v734
    %v736 = vadd.s32 %v735, 536870912
    %v737 = vshrl.u32 %v736, 30
    %v738 = vshll.u32 %v737, 30
    %v739 = vsub.s32 %v735, %v738
    %vm740 = vcmp.lt.s32.totalorder %v739, 0
    %v741 = vsub.s32 0, %v739
    %v742 = vsel %vm740, %v741, %v739
    %v743 = vclz %v742
    %v744 = vsub.s32 %v743, 2
    %vm745 = vcmp.gt.s32.totalorder 0, %v744
    %v746 = vsel %vm745, 0, %v744
    %v747 = vsub.s32 32, %v746
    %v748 = vshll.u32 %v739, %v746
    %v749 = vshrl.u32 %v731, %v747
    %v750 = vor.u32 %v748, %v749
    %v751 = vsub.s32 4294967266, %v746
    %v752 = vadd.s32 %v751, 127
    %v753 = vshll.u32 %v752, 23
    %v754 = vor.u32 4788187, %v753
    %v755 = vand.u32 2147483647, %v754
    %v757 = vcvt.s32.f32 %v750
    %v758 = vmul.f32 %v757, %v755
    %v759 = vxor.u32 %v758, 2147483648
    %v760 = vsel %vm677, %v759, %v758
    %v761 = vsub.s32 4, %v737
    %v762 = vsel %vm677, %v761, %v737
    %v763 = vsel %vm676, %v142, %v760
    %v764 = vsel %vm676, 0, %v762
    %v765 = vcosq.f32.pop %v763
    %v766 = vsinq.f32.pop %v763
    %vm767 = vweird.f32 %v142
    %v768 = vadd.s32 %v764, 3
    %v769 = vand.u32 %v768, 3
    %vm770 = vcmp.lt.s32.totalorder %v769, 2
    %vm771 = vcmp.eq.s32.totalorder %v769, 0
    %v772 = vxor.u32 %v766, 2147483648
    %v773 = vsel %vm771, %v765, %v772
    %vm774 = vcmp.eq.s32.totalorder %v769, 2
    %v775 = vxor.u32 %v765, 2147483648
    %v776 = vsel %vm774, %v775, %v766
    %v777 = vsel %vm770, %v773, %v776
    %v778 = vsel %vm767, nan, %v777
    %v779 = vand.u32 2147483647, %v147
    %vm780 = vcmp.le.f32.partialorder %v779, 0.7853982
    %vm781 = vcmp.lt.s32.totalorder %v147, 0
    %v782 = vand.u32 %v147, 2139095040
    %v783 = vshrl.u32 %v782, 23
    %v784 = vsub.s32 %v783, 127
    %v785 = vand.u32 2147483647, %v147
    %v786 = vand.u32 %v785, 8388607
    %v787 = vor.u32 %v786, 8388608
    %v788 = vsub.s32 0, %v787
    %v789 = vadd.s32 %v784, 1
    %vm790 = vcmp.gt.s32.totalorder %v789, 0
    %v791 = vsel %vm790, %v789, 0
    %v792 = vshrl.u32 %v791, 5
    %v793 = vand.u32 %v791, 31
    %v794 = vsub.s32 32, %v793
    %v795 = vshrl.u32 683565275, %v794
    %v796 = vshll.u32 683565275, %v793
    %v797 = vshrl.u32 2475754826, %v794
    %v798 = vor.u32 %v796, %v797
    %v799 = vshll.u32 2475754826, %v793
    %v800 = vshrl.u32 2131351028, %v794
    %v801 = vor.u32 %v799, %v800
    %v802 = vshll.u32 2131351028, %v793
    %v803 = vshrl.u32 2102212464, %v794
    %v804 = vor.u32 %v802, %v803
    %v805 = vshll.u32 2102212464, %v793
    %v806 = vshrl.u32 920167782, %v794
    %v807 = vor.u32 %v805, %v806
    %v808 = vshll.u32 920167782, %v793
    %v809 = vshrl.u32 1326507024, %v794
    %v810 = vor.u32 %v808, %v809
    %vm811 = vcmp.lt.s32.totalorder %v792, 1
    %vm812 = vcmp.lt.s32.totalorder %v792, 2
    %vm813 = vcmp.lt.s32.totalorder %v792, 3
    %vm814 = vcmp.lt.s32.totalorder %v792, 4
    %v815 = vsel %vm811, %v795, %v798
    %v816 = vsel %vm814, %v804, 2102212464
    %v817 = vsel %vm813, %v801, %v816
    %v818 = vsel %vm812, %v815, %v817
    %v819 = vsel %vm811, %v798, %v801
    %v820 = vsel %vm814, %v807, 920167782
    %v821 = vsel %vm813, %v804, %v820
    %v822 = vsel %vm812, %v819, %v821
    %v823 = vsel %vm811, %v801, %v804
    %v824 = vsel %vm814, %v810, 1326507024
    %v825 = vsel %vm813, %v807, %v824
    %v826 = vsel %vm812, %v823, %v825
    %v827 = vshll.u32 %v787, 8
    %v828 = vmul.u32.u64.compose %v827, %v826
    %v829 = vextract.low.u32 %v828
    %v830 = vextract.high.u32 %v828
    %v831 = vmul.u32.u64.compose %v827, %v822
    %v832 = vextract.low.u32 %v831
    %v833 = vextract.high.u32 %v831
    %v834 = vmul.u32 %v827, %v818
    %v835 = vadd.s32 %v830, %v832
    %vm836 = vc.u32 %v830, %v832
    %v837 = vadd.s32 %v833, 1
    %v838 = vsel %vm836, %v837, %v833
    %v839 = vadd.s32 %v834, %v838
    %v840 = vadd.s32 %v839, 536870912
    %v841 = vshrl.u32 %v840, 30
    %v842 = vshll.u32 %v841, 30
    %v843 = vsub.s32 %v839, %v842
    %vm844 = vcmp.lt.s32.totalorder %v843, 0
    %v845 = vsub.s32 0, %v843
    %v846 = vsel %vm844, %v845, %v843
    %v847 = vclz %v846
    %v848 = vsub.s32 %v847, 2
    %vm849 = vcmp.gt.s32.totalorder 0, %v848
    %v850 = vsel %vm849, 0, %v848
    %v851 = vsub.s32 32, %v850
    %v852 = vshll.u32 %v843, %v850
    %v853 = vshrl.u32 %v835, %v851
    %v854 = vor.u32 %v852, %v853
    %v855 = vsub.s32 4294967266, %v850
    %v856 = vadd.s32 %v855, 127
    %v857 = vshll.u32 %v856, 23
    %v858 = vor.u32 4788187, %v857
    %v859 = vand.u32 2147483647, %v858
    %v861 = vcvt.s32.f32 %v854
    %v862 = vmul.f32 %v861, %v859
    %v863 = vxor.u32 %v862, 2147483648
    %v864 = vsel %vm781, %v863, %v862
    %v865 = vsub.s32 4, %v841
    %v866 = vsel %vm781, %v865, %v841
    %v867 = vsel %vm780, %v147, %v864
    %v868 = vsel %vm780, 0, %v866
    %v869 = vcosq.f32.pop %v867
    %v870 = vsinq.f32.pop %v867
    %vm871 = vweird.f32 %v147
    %v872 = vadd.s32 %v868, 3
    %v873 = vand.u32 %v872, 3
    %vm874 = vcmp.lt.s32.totalorder %v873, 2
    %vm875 = vcmp.eq.s32.totalorder %v873, 0
    %v876 = vxor.u32 %v870, 2147483648
    %v877 = vsel %vm875, %v869, %v876
    %vm878 = vcmp.eq.s32.totalorder %v873, 2
    %v879 = vxor.u32 %v869, 2147483648
    %v880 = vsel %vm878, %v879, %v870
    %v881 = vsel %vm874, %v877, %v880
    %v882 = vsel %vm871, nan, %v881
    %v883 = vand.u32 2147483647, %v152
    %vm884 = vcmp.le.f32.partialorder %v883, 0.7853982
    %vm885 = vcmp.lt.s32.totalorder %v152, 0
    %v886 = vand.u32 %v152, 2139095040
    %v887 = vshrl.u32 %v886, 23
    %v888 = vsub.s32 %v887, 127
    %v889 = vand.u32 2147483647, %v152
    %v890 = vand.u32 %v889, 8388607
    %v891 = vor.u32 %v890, 8388608
    %v892 = vsub.s32 0, %v891
    %v893 = vadd.s32 %v888, 1
    %vm894 = vcmp.gt.s32.totalorder %v893, 0
    %v895 = vsel %vm894, %v893, 0
    %v896 = vshrl.u32 %v895, 5
    %v897 = vand.u32 %v895, 31
    %v898 = vsub.s32 32, %v897
    %v899 = vshrl.u32 683565275, %v898
    %v900 = vshll.u32 683565275, %v897
    %v901 = vshrl.u32 2475754826, %v898
    %v902 = vor.u32 %v900, %v901
    %v903 = vshll.u32 2475754826, %v897
    %v904 = vshrl.u32 2131351028, %v898
    %v905 = vor.u32 %v903, %v904
    %v906 = vshll.u32 2131351028, %v897
    %v907 = vshrl.u32 2102212464, %v898
    %v908 = vor.u32 %v906, %v907
    %v909 = vshll.u32 2102212464, %v897
    %v910 = vshrl.u32 920167782, %v898
    %v911 = vor.u32 %v909, %v910
    %v912 = vshll.u32 920167782, %v897
    %v913 = vshrl.u32 1326507024, %v898
    %v914 = vor.u32 %v912, %v913
    %vm915 = vcmp.lt.s32.totalorder %v896, 1
    %vm916 = vcmp.lt.s32.totalorder %v896, 2
    %vm917 = vcmp.lt.s32.totalorder %v896, 3
    %vm918 = vcmp.lt.s32.totalorder %v896, 4
    %v919 = vsel %vm915, %v899, %v902
    %v920 = vsel %vm918, %v908, 2102212464
    %v921 = vsel %vm917, %v905, %v920
    %v922 = vsel %vm916, %v919, %v921
    %v923 = vsel %vm915, %v902, %v905
    %v924 = vsel %vm918, %v911, 920167782
    %v925 = vsel %vm917, %v908, %v924
    %v926 = vsel %vm916, %v923, %v925
    %v927 = vsel %vm915, %v905, %v908
    %v928 = vsel %vm918, %v914, 1326507024
    %v929 = vsel %vm917, %v911, %v928
    %v930 = vsel %vm916, %v927, %v929
    %v931 = vshll.u32 %v891, 8
    %v932 = vmul.u32.u64.compose %v931, %v930
    %v933 = vextract.low.u32 %v932
    %v934 = vextract.high.u32 %v932
    %v935 = vmul.u32.u64.compose %v931, %v926
    %v936 = vextract.low.u32 %v935
    %v937 = vextract.high.u32 %v935
    %v938 = vmul.u32 %v931, %v922
    %v939 = vadd.s32 %v934, %v936
    %vm940 = vc.u32 %v934, %v936
    %v941 = vadd.s32 %v937, 1
    %v942 = vsel %vm940, %v941, %v937
    %v943 = vadd.s32 %v938, %v942
    %v944 = vadd.s32 %v943, 536870912
    %v945 = vshrl.u32 %v944, 30
    %v946 = vshll.u32 %v945, 30
    %v947 = vsub.s32 %v943, %v946
    %vm948 = vcmp.lt.s32.totalorder %v947, 0
    %v949 = vsub.s32 0, %v947
    %v950 = vsel %vm948, %v949, %v947
    %v951 = vclz %v950
    %v952 = vsub.s32 %v951, 2
    %vm953 = vcmp.gt.s32.totalorder 0, %v952
    %v954 = vsel %vm953, 0, %v952
    %v955 = vsub.s32 32, %v954
    %v956 = vshll.u32 %v947, %v954
    %v957 = vshrl.u32 %v939, %v955
    %v958 = vor.u32 %v956, %v957
    %v959 = vsub.s32 4294967266, %v954
    %v960 = vadd.s32 %v959, 127
    %v961 = vshll.u32 %v960, 23
    %v962 = vor.u32 4788187, %v961
    %v963 = vand.u32 2147483647, %v962
    %v965 = vcvt.s32.f32 %v958
    %v966 = vmul.f32 %v965, %v963
    %v967 = vxor.u32 %v966, 2147483648
    %v968 = vsel %vm885, %v967, %v966
    %v969 = vsub.s32 4, %v945
    %v970 = vsel %vm885, %v969, %v945
    %v971 = vsel %vm884, %v152, %v968
    %v972 = vsel %vm884, 0, %v970
    %v973 = vcosq.f32.pop %v971
    %v974 = vsinq.f32.pop %v971
    %vm975 = vweird.f32 %v152
    %v976 = vadd.s32 %v972, 3
    %v977 = vand.u32 %v976, 3
    %vm978 = vcmp.lt.s32.totalorder %v977, 2
    %vm979 = vcmp.eq.s32.totalorder %v977, 0
    %v980 = vxor.u32 %v974, 2147483648
    %v981 = vsel %vm979, %v973, %v980
    %vm982 = vcmp.eq.s32.totalorder %v977, 2
    %v983 = vxor.u32 %v973, 2147483648
    %v984 = vsel %vm982, %v983, %v974
    %v985 = vsel %vm978, %v981, %v984
    %v986 = vsel %vm975, nan, %v985
    %vm987 = vcmask 760832
    %988 = vst.msk [vmem:[#allocation2] sm:$0xff] %vm987, %v258
    %989 = vst.msk [vmem:[#allocation2 + $0x8] sm:$0xff] %vm987, %v362
    %990 = vst.msk [vmem:[#allocation2 + $0x10] sm:$0xff] %vm987, %v466
    %991 = vst.msk [vmem:[#allocation2 + $0x18] sm:$0xff] %vm987, %v570
    %992 = vst.msk [vmem:[#allocation2 + $0x20] sm:$0xff] %vm987, %v674
    %993 = vst.msk [vmem:[#allocation2 + $0x28] sm:$0xff] %vm987, %v778
    %994 = vst.msk [vmem:[#allocation2 + $0x30] sm:$0xff] %vm987, %v882
    %995 = vst.msk [vmem:[#allocation2 + $0x38] sm:$0xff] %vm987, %v986
    // Predicated region
    $region10: #{tpu_custom_call.1} parent=1 // pred_check
      _
    $region11: #{tpu_custom_call.1} parent=1 // pred_check_branch
      %997 = sbr.rel (0) target = $region13
    $region12: #{tpu_custom_call.1} parent=1 // pred_region
      %s999 = ssub.s32 1024, 1024
      %1000 = vsyncadd [#allocation3], %s999
      %s1001 = sshll.u32 [#allocation2], 4
      %s1002 = int_to_ptr.vmem [resolvable:$true] %s1001
      %1007 = dma.vmem_to_hbm [thread:$0]  %s1002, 1024, %s2, [#allocation3], 128, 128, 8
    $region13: #{tpu_custom_call.1} parent=1 // pred_fallthru
      _
    // Predicated region
    $region14: #{tpu_custom_call.1} parent=1 // pred_check
      _
    $region15: #{tpu_custom_call.1} parent=1 // pred_check_branch
      %1009 = sbr.rel (0) target = $region17
    $region16: #{tpu_custom_call.1} parent=1 // pred_region
      %1010 = dma.done [#allocation3], 1024
    $region17: #{tpu_custom_call.1} parent=1 // pred_fallthru
      _
    %1011 = vsyncpa [#allocation3], 1

</llo_original>
